<compile_context>
chip_gen: v5e
topology: v5e:2x2
jax: 0.10.0
libtpu: 0.0.40
codegen_flags: <defaults>
</compile_context>

<pallas_src>
import jax
import jax.numpy as jnp
from jax.experimental import pallas as pl
from jax.experimental.pallas import tpu as pltpu


def _round_up(v, m):
    return ((v + m - 1) // m) * m


# ----------------------------------------------------------------------------
# Fast path: whole Din in one K step, no accumulator scratch.
#   x_ref : (bm, Din_p)        input rows (native dtype, cast to w dtype here)
#   w_ref : (Din_p, 2*Dout_p)  [Wf^T | Wg^T], bf16, VMEM-resident (const index)
#   b_ref : (1, 2*Dout_p)      [bf | bg], f32
#   o_ref : (bm, Dout_p)       lane-dense output block
# ----------------------------------------------------------------------------
def _gated_linear_kernel_noacc(x_ref, w_ref, b_ref, o_ref):
    dout_p = o_ref.shape[-1]
    xv = x_ref[...].astype(w_ref.dtype)           # feed the MXU bf16 operands
    fg = jnp.dot(xv, w_ref[...], preferred_element_type=jnp.float32)
    fg = fg + b_ref[...]                           # f32 bias, added once
    f = fg[:, :dout_p]                             # lane-boundary split
    g = fg[:, dout_p:]
    o_ref[...] = (f * jax.nn.sigmoid(g)).astype(o_ref.dtype)


# ----------------------------------------------------------------------------
# K-tiled path: f32 accumulator resident across the reduction axis.
# Bias is folded into the k==0 init so the finalize epilogue is just
# split -> sigmoid -> multiply -> cast -> store.
# ----------------------------------------------------------------------------
def _gated_linear_kernel_acc(x_ref, w_ref, b_ref, o_ref, acc_ref):
    k = pl.program_id(1)

    @pl.when(k == 0)
    def _init():
        acc_ref[...] = jnp.broadcast_to(b_ref[...], acc_ref.shape)

    xv = x_ref[...].astype(w_ref.dtype)
    acc_ref[...] += jnp.dot(xv, w_ref[...], preferred_element_type=jnp.float32)

    @pl.when(k == pl.num_programs(1) - 1)
    def _finalize():
        dout_p = o_ref.shape[-1]
        fg = acc_ref[...]
        o_ref[...] = (fg[:, :dout_p] * jax.nn.sigmoid(fg[:, dout_p:])
                      ).astype(o_ref.dtype)


# ----------------------------------------------------------------------------
# Wrapper.
# ----------------------------------------------------------------------------
def gated_linear(x, w_cat, b_cat, *, dout, k_block=None, bm=256):
    """y = (x @ Wf^T + bf) * sigmoid(x @ Wg^T + bg).

    x      : (B, Din)
    w_cat  : (Din_p, 2*Dout_p)  concatenated, padded, bf16 (built at init)
    b_cat  : (1, 2*Dout_p)      concatenated, padded, f32  (built at init)
    dout   : true (unpadded) out_features
    k_block: None -> single K step (weights VMEM resident); else K tile size
             (multiple of 128) for large Din.
    """
    B, Din = x.shape
    din_p, two_dout_p = w_cat.shape
    dout_p = two_dout_p // 2
    out_dtype = x.dtype

    # --- batch padding / block choice (8/16-granular, not tile-granular) ----
    sub = 16
    Bp = _round_up(B, sub)
    if Bp <= bm:
        bm_eff = Bp
    else:
        bq = 64                                   # small quantum: waste < 64 rows
        Bp = _round_up(Bp, bq)
        bm_eff = bq
        for cand in range((bm // bq) * bq, bq - 1, -bq):
            if Bp % cand == 0:
                bm_eff = cand
                break
    # v7x megacore: prefer >= 2 blocks along the "parallel" batch axis.
    if Bp // bm_eff == 1 and bm_eff >= 32:
        bm_eff //= 2
    nb = Bp // bm_eff

    # --- pad x only (weights/biases were padded once at init) ---------------
    if (Bp, din_p) != (B, Din):
        x = jnp.pad(x, ((0, Bp - B), (0, din_p - Din)))

    w_bytes = din_p * two_dout_p * w_cat.dtype.itemsize
    common_bytes = (Bp * din_p * x.dtype.itemsize
                    + two_dout_p * 4
                    + Bp * dout_p * jnp.dtype(out_dtype).itemsize)
    flops = 2 * Bp * din_p * two_dout_p + 3 * Bp * dout_p
    transc = 2 * Bp * dout_p

    if k_block is None:
        # Fast path: weights resident (constant block index), x streamed once.
        cost = pl.CostEstimate(flops=flops, transcendentals=transc,
                               bytes_accessed=common_bytes + w_bytes)
        out = pl.pallas_call(
            _gated_linear_kernel_noacc,
            out_shape=jax.ShapeDtypeStruct((Bp, dout_p), out_dtype),
            grid_spec=pltpu.PrefetchScalarGridSpec(
                num_scalar_prefetch=0,
                grid=(nb,),
                in_specs=[
                    pl.BlockSpec((bm_eff, din_p), lambda i: (i, 0)),       # x
                    pl.BlockSpec((din_p, two_dout_p), lambda i: (0, 0)),   # W (resident)
                    pl.BlockSpec((1, two_dout_p), lambda i: (0, 0)),       # bias
                ],
                out_specs=pl.BlockSpec((bm_eff, dout_p), lambda i: (i, 0)),
            ),
            compiler_params=pltpu.CompilerParams(
                dimension_semantics=("parallel",),
                vmem_limit_bytes=48 * 1024 * 1024,
            ),
            cost_estimate=cost,
        )(x, w_cat, b_cat)
    else:
        bk = k_block
        nk = din_p // bk
        cost = pl.CostEstimate(flops=flops, transcendentals=transc,
                               bytes_accessed=common_bytes + nb * w_bytes)
        out = pl.pallas_call(
            _gated_linear_kernel_acc,
            out_shape=jax.ShapeDtypeStruct((Bp, dout_p), out_dtype),
            grid_spec=pltpu.PrefetchScalarGridSpec(
                num_scalar_prefetch=0,
                grid=(nb, nk),
                in_specs=[
                    pl.BlockSpec((bm_eff, bk), lambda i, k: (i, k)),       # x
                    pl.BlockSpec((bk, two_dout_p), lambda i, k: (k, 0)),   # W
                    pl.BlockSpec((1, two_dout_p), lambda i, k: (0, 0)),    # bias
                ],
                out_specs=pl.BlockSpec((bm_eff, dout_p), lambda i, k: (i, 0)),
                scratch_shapes=[pltpu.VMEM((bm_eff, two_dout_p), jnp.float32)],
            ),
            compiler_params=pltpu.CompilerParams(
                dimension_semantics=("parallel", "arbitrary"),
                vmem_limit_bytes=48 * 1024 * 1024,
            ),
            cost_estimate=cost,
        )(x, w_cat, b_cat)

    if (Bp, dout_p) != (B, dout):
        out = out[:B, :dout]
    return out


# ----------------------------------------------------------------------------
# Module glue: PyTorch-equivalent parameter init (nn.Linear default U(±1/√fan)),
# stored pre-transposed, pre-padded, f/g-concatenated and cast to bf16 ONCE so
# the forward wrapper does zero layout work on the weights.
# ----------------------------------------------------------------------------
def init_gated_linear_params(key, in_features, out_features, *,
                             param_dtype=jnp.bfloat16,
                             max_resident_k=2048, k_block=512):
    assert k_block % 128 == 0
    kfw, kfb, kgw, kgb = jax.random.split(key, 4)
    bound = 1.0 / (in_features ** 0.5)

    def uni(k, shape):
        return jax.random.uniform(k, shape, jnp.float32,
                                  minval=-bound, maxval=bound)

    wf_t = uni(kfw, (in_features, out_features))   # == layer_f.weight.T
    wg_t = uni(kgw, (in_features, out_features))   # == layer_g.weight.T
    bf = uni(kfb, (out_features,))
    bg = uni(kgb, (out_features,))

    dout_p = _round_up(out_features, 128)          # lane-dense out + split boundary
    if in_features <= max_resident_k:
        din_p = _round_up(in_features, 8)          # single K step, weights resident
        kb = None
    else:
        din_p = _round_up(in_features, k_block)    # K-tiled reduction
        kb = k_block

    def pad_w(w):
        return jnp.pad(w, ((0, din_p - in_features), (0, dout_p - out_features)))

    def pad_b(b):
        return jnp.pad(b, (0, dout_p - out_features))

    w_cat = jnp.concatenate([pad_w(wf_t), pad_w(wg_t)], axis=1).astype(param_dtype)
    b_cat = jnp.concatenate([pad_b(bf), pad_b(bg)]).reshape(1, 2 * dout_p
                                                            ).astype(jnp.float32)
    return dict(w_cat=w_cat, b_cat=b_cat,
                in_features=in_features, out_features=out_features,
                k_block=kb)


def gated_linear_forward(params, t, x, **kw):
    # `t` is accepted for DiffEqLayer API compatibility but unused (matches
    # the PyTorch GatedLinear.forward signature).
    del t
    return gated_linear(x, params["w_cat"], params["b_cat"],
                        dout=params["out_features"],
                        k_block=params["k_block"], **kw)


# Pure-JAX reference following the exact same (bf16-weight) math path.
def gated_linear_reference(params, t, x):
    del t
    w, b = params["w_cat"], params["b_cat"]
    din_p, two_dout_p = w.shape
    dout_p = two_dout_p // 2
    dout = params["out_features"]
    xin = x
    if xin.shape[1] != din_p:
        xin = jnp.pad(xin, ((0, 0), (0, din_p - xin.shape[1])))
    fg = jnp.dot(xin.astype(w.dtype), w, preferred_element_type=jnp.float32) + b
    f = fg[:, :dout]
    g = fg[:, dout_p:dout_p + dout]
    return (f * jax.nn.sigmoid(g)).astype(x.dtype)


if __name__ == "__main__":
    key = jax.random.PRNGKey(0)
    kp, kx, kp2, kx2 = jax.random.split(key, 4)
    t = jnp.float32(0.5)

    # --- demo shapes consistent with the module (hidden=32, batch=8) --------
    in_features, out_features, batch = 32, 32, 8
    params = init_gated_linear_params(kp, in_features, out_features)
    x = jax.random.normal(kx, (batch, in_features), jnp.float32)

    y = jax.block_until_ready(gated_linear_forward(params, t, x))
    y_ref = gated_linear_reference(params, t, x)
    assert y.shape == (batch, out_features)
    assert jnp.allclose(y, y_ref, atol=1e-3, rtol=1e-3), "mismatch (fast path)"

    # --- coverage: non-divisible batch (grid>1 on the parallel axis) plus a
    # forced K-tiled path (accumulator init, last-k finalize, pad + slice). ---
    params2 = init_gated_linear_params(kp2, 200, 48,
                                       max_resident_k=128, k_block=128)
    x2 = jax.random.normal(kx2, (37, 200), jnp.float32)
    y2 = jax.block_until_ready(gated_linear_forward(params2, t, x2))
    y2_ref = gated_linear_reference(params2, t, x2)
    assert y2.shape == (37, 48)
    assert jnp.allclose(y2, y2_ref, atol=1e-3, rtol=1e-3), "mismatch (K-tiled path)"

    print("KERNEL_OK")
</pallas_src>

<mosaic_0001>
module attributes {stable_mosaic.version = 11 : i64} {
  func.func @_gated_linear_kernel_noacc(%arg0: i32, %arg1: memref<16x32xf32, #tpu.memory_space<vmem>>, %arg2: memref<32x256xbf16, #tpu.memory_space<vmem>>, %arg3: memref<1x256xf32, #tpu.memory_space<vmem>>, %arg4: memref<16x128xf32, #tpu.memory_space<vmem>>) attributes {dimension_semantics = [#tpu.dimension_semantics<parallel>], iteration_bounds = array<i64: 1>, scalar_prefetch = 0 : i64, scratch_operands = 0 : i64, tpu.core_type = #tpu.core_type<tc>, window_params = [{transform_indices = @transform_0, window_bounds = array<i64: 16, 32>}, {pipeline_mode = #tpu.pipeline_mode<synchronous>, transform_indices = @transform_1, window_bounds = array<i64: 32, 256>}, {pipeline_mode = #tpu.pipeline_mode<synchronous>, transform_indices = @transform_2, window_bounds = array<i64: 1, 256>}, {transform_indices = @transform_3, window_bounds = array<i64: 16, 128>}]} {
    %c0 = arith.constant 0 : index
    %c0_0 = arith.constant 0 : index
    %0 = vector.load %arg1[%c0, %c0_0] : memref<16x32xf32, #tpu.memory_space<vmem>>, vector<16x32xf32>
    %1 = arith.truncf %0 : vector<16x32xf32> to vector<16x32xbf16>
    %c0_1 = arith.constant 0 : index
    %c0_2 = arith.constant 0 : index
    %2 = vector.load %arg2[%c0_1, %c0_2] : memref<32x256xbf16, #tpu.memory_space<vmem>>, vector<32x256xbf16>
    %cst = arith.constant dense<0.000000e+00> : vector<16x256xf32>
    %3 = tpu.matmul %1, %2, %cst {dimension_numbers = #tpu.dot_dimension_numbers<[1], [0], [0], [1], [0, 0, 1, 1], [], []>} : vector<16x32xbf16>, vector<32x256xbf16>, vector<16x256xf32> -> vector<16x256xf32>
    %c0_3 = arith.constant 0 : index
    %c0_4 = arith.constant 0 : index
    %4 = vector.load %arg3[%c0_3, %c0_4] : memref<1x256xf32, #tpu.memory_space<vmem>>, vector<1x256xf32>
    %5 = vector.broadcast %4 : vector<1x256xf32> to vector<16x256xf32>
    %6 = arith.addf %3, %5 : vector<16x256xf32>
    %7 = vector.extract_strided_slice %6 {offsets = [0, 0], sizes = [16, 128], strides = [1, 1]} : vector<16x256xf32> to vector<16x128xf32>
    %8 = vector.extract_strided_slice %6 {offsets = [0, 128], sizes = [16, 128], strides = [1, 1]} : vector<16x256xf32> to vector<16x128xf32>
    %9 = arith.negf %8 : vector<16x128xf32>
    %10 = math.exp %9 : vector<16x128xf32>
    %cst_5 = arith.constant 1.000000e+00 : f32
    %11 = vector.broadcast %cst_5 : f32 to vector<16x128xf32>
    %12 = arith.addf %11, %10 : vector<16x128xf32>
    %13 = arith.divf %11, %12 : vector<16x128xf32>
    %14 = arith.mulf %7, %13 : vector<16x128xf32>
    %c0_6 = arith.constant 0 : index
    %c0_7 = arith.constant 0 : index
    %15 = vector.load %arg4[%c0_6, %c0_7] : memref<16x128xf32, #tpu.memory_space<vmem>>, vector<16x128xf32>
    tpu.vector_store %arg4[%c0_6, %c0_7], %14 {strides = array<i32>} : memref<16x128xf32, #tpu.memory_space<vmem>>, vector<16x128xf32>,
    return
  }
  func.func @transform_0(%arg0: i32) -> (i32, i32) {
    %c0_i32 = arith.constant 0 : i32
    %c0_i32_0 = arith.constant 0 : i32
    return %arg0, %c0_i32 : i32, i32
  }
  func.func @transform_1(%arg0: i32) -> (i32, i32) {
    %c0_i32 = arith.constant 0 : i32
    %c0_i32_0 = arith.constant 0 : i32
    %c0_i32_1 = arith.constant 0 : i32
    return %c0_i32, %c0_i32_0 : i32, i32
  }
  func.func @transform_2(%arg0: i32) -> (i32, i32) {
    %c0_i32 = arith.constant 0 : i32
    %c0_i32_0 = arith.constant 0 : i32
    %c0_i32_1 = arith.constant 0 : i32
    return %c0_i32, %c0_i32_0 : i32, i32
  }
  func.func @transform_3(%arg0: i32) -> (i32, i32) {
    %c0_i32 = arith.constant 0 : i32
    %c0_i32_0 = arith.constant 0 : i32
    return %arg0, %c0_i32 : i32, i32
  }
}

</mosaic_0001>

<llo_original>
// kernel: tpu_custom_call.1
$region0: #{tpu_custom_call.1}
  #allocation0 [shape = 'u32[]', space=smem, size = 0x4, offset = 0x4, fixed_abs, tag = 'smem constant byte address 0x4 - core index']
  #allocation1 [shape = 'u32[72,128]{1,0:T(1,128)}', space=vmem, size = 0x9000, scoped, tag = 'internal scratch']
  %s0 = inlined_call_operand.hbm [shape: f32[16,32], index: 0, kind: input, shape index: {}]
  %s1 = inlined_call_operand.hbm [shape: bf16[32,256], index: 1, kind: input, shape index: {}]
  %s2 = inlined_call_operand.hbm [shape: f32[1,256], index: 2, kind: input, shape index: {}]
  %s3 = inlined_call_operand.hbm [shape: f32[16,128], index: 3, kind: output, shape index: {}]
  %s4 = sld [smem:[#allocation0]]
  $region34: #{tpu_custom_call.1} parent=0
    _
  %s6 = ssub.s32 1, %s4
  %s7 = scalar_select 0, %s6, %s4
  $region1: #{tpu_custom_call.1} parent=0
    #allocation2 [shape = 'u8[8192]{0}', space=vmem, size = 0x2000, scoped, tag = 'input window, operand 0, single buffered']
    #allocation3 [shape = 's32[1]{0}', space=sflag, size = 0x4, scoped, tag = 'scoped memory for tpu_custom_call.1']
    #allocation4 [shape = 's32[1]{0}', space=sflag, size = 0x4, scoped, tag = 'scoped memory for tpu_custom_call.1']
    #allocation5 [shape = 'u8[16384]{0}', space=vmem, size = 0x4000, scoped, tag = 'input window, operand 1, single buffered']
    #allocation6 [shape = 's32[1]{0}', space=sflag, size = 0x4, scoped, tag = 'scoped memory for tpu_custom_call.1']
    #allocation7 [shape = 'u8[1024]{0}', space=vmem, size = 0x400, scoped, tag = 'input window, operand 2, single buffered']
    #allocation8 [shape = 'u8[8192]{0}', space=vmem, size = 0x2000, scoped, tag = 'output window, operand 0, single buffered']
    %8 = vsyncpa [#allocation3], 0
    %9 = vsyncpa [#allocation6], 0
    %10 = vsyncpa [#allocation4], 0
    // Predicated region
    $region2: #{tpu_custom_call.1} parent=1 // pred_check
      _
    $region3: #{tpu_custom_call.1} parent=1 // pred_check_branch
      %12 = sbr.rel (0) target = $region5
    $region4: #{tpu_custom_call.1} parent=1 // pred_region
      %14 = vsyncadd [#allocation3], 0
      %s15 = sshll.u32 %s0, 4
      %s16 = int_to_ptr.hbm [resolvable:$true] %s15
      %s17 = sshll.u32 [#allocation2], 4
      %s18 = int_to_ptr.vmem [resolvable:$true] %s17
      %23 = dma.hbm_to_vmem [thread:$0]  %s16, 256, %s18, [#allocation3], 128, 128, 8
    $region5: #{tpu_custom_call.1} parent=1 // pred_fallthru
      _
    // Predicated region
    $region6: #{tpu_custom_call.1} parent=1 // pred_check
      _
    $region7: #{tpu_custom_call.1} parent=1 // pred_check_branch
      %25 = sbr.rel (0) target = $region9
    $region8: #{tpu_custom_call.1} parent=1 // pred_region
      %27 = vsyncadd [#allocation6], 0
      %s28 = sshll.u32 %s1, 4
      %s29 = int_to_ptr.hbm [resolvable:$true] %s28
      %s30 = sshll.u32 [#allocation5], 4
      %s31 = int_to_ptr.vmem [resolvable:$true] %s30
      %36 = dma.hbm_to_vmem [thread:$0]  %s29, 512, %s31, [#allocation6], 128, 128, 8
    $region9: #{tpu_custom_call.1} parent=1 // pred_fallthru
      _
    // Predicated region
    $region10: #{tpu_custom_call.1} parent=1 // pred_check
      _
    $region11: #{tpu_custom_call.1} parent=1 // pred_check_branch
      %38 = sbr.rel (0) target = $region13
    $region12: #{tpu_custom_call.1} parent=1 // pred_region
      %40 = vsyncadd [#allocation6], 0
      %s42 = sshll.u32 %s2, 4
      %s43 = int_to_ptr.hbm [resolvable:$true] %s42
      %s44 = sshll.u32 [#allocation7], 4
      %s45 = int_to_ptr.vmem [resolvable:$true] %s44
      %47 = dma.hbm_to_vmem [thread:$0]  %s43, 32, %s45, [#allocation6]
    $region13: #{tpu_custom_call.1} parent=1 // pred_fallthru
      _
    // Predicated region
    $region14: #{tpu_custom_call.1} parent=1 // pred_check
      _
    $region15: #{tpu_custom_call.1} parent=1 // pred_check_branch
      %49 = sbr.rel (0) target = $region17
    $region16: #{tpu_custom_call.1} parent=1 // pred_region
      %51 = dma.done [#allocation3], 256
    $region17: #{tpu_custom_call.1} parent=1 // pred_fallthru
      _
    // Predicated region
    $region18: #{tpu_custom_call.1} parent=1 // pred_check
      _
    $region19: #{tpu_custom_call.1} parent=1 // pred_check_branch
      %53 = sbr.rel (0) target = $region21
    $region20: #{tpu_custom_call.1} parent=1 // pred_region
      %55 = dma.done [#allocation6], 512
    $region21: #{tpu_custom_call.1} parent=1 // pred_fallthru
      _
    // Predicated region
    $region22: #{tpu_custom_call.1} parent=1 // pred_check
      _
    $region23: #{tpu_custom_call.1} parent=1 // pred_check_branch
      %57 = sbr.rel (0) target = $region25
    $region24: #{tpu_custom_call.1} parent=1 // pred_region
      %59 = dma.done [#allocation6], 32
    $region25: #{tpu_custom_call.1} parent=1 // pred_fallthru
      _
    %v61 = vld [vmem:[#allocation2] sm:$0xff]
    %v62 = vld [vmem:[#allocation2 + $0x8] sm:$0xff]
    %v63 = vpack.c.bf16 %v62, %v61
    %v64 = vld [vmem:[#allocation5] sm:$0xff]
    %v65 = vld [vmem:[#allocation5 + $0x8] sm:$0xff]
    %v66 = vld [vmem:[#allocation5 + $0x10] sm:$0xff]
    %v67 = vld [vmem:[#allocation5 + $0x18] sm:$0xff]
    %v68 = vld [vmem:[#allocation7] sm:$0x3]
    %v70 = vperm.slane %v68, 0
    %v71 = vperm.slane %v68, 1
    %v78 = vunpack.c.l.b16 %v64
    %v79 = vunpack.c.h.b16 %v64
    %v80 = vunpack.c.l.b16 %v65
    %v81 = vunpack.c.h.b16 %v65
    %v82 = vunpack.c.l.b16 %v66
    %v83 = vunpack.c.h.b16 %v66
    %v84 = vunpack.c.l.b16 %v67
    %v85 = vunpack.c.h.b16 %v67
    %v86 = vpack.c.b16 %v80, %v78
    %v87 = vpack.c.b16 %v81, %v79
    %v88 = vpack.c.b16 %v84, %v82
    %v89 = vpack.c.b16 %v85, %v83
    %vm94 = vcmask 261120
    %v96 = vsel %vm94, %v63, 0
    %98 = vmatpush.bf16.msra.mxu0 0
    %99 = vmatpush.bf16.msra.mxu0 0
    %100 = vmatpush.bf16.msra.mxu0 0
    %101 = vmatpush.bf16.msra.mxu0 0
    %102 = vmatpush.bf16.msra.mxu0 0
    %103 = vmatpush.bf16.msra.mxu0 0
    %104 = vmatpush.bf16.msra.mxu0 %v88
    %105 = vmatpush.bf16.msra.mxu0 %v86
    %106 = vmatmul.bf16.gmra.mxu0 %v96
    %v107 = vpop.f32.mrf.mxu0
    %v108 = vadd.f32 %v70, %v107
    %v109 = vpop.f32.mrf.mxu0
    %v110 = vadd.f32 %v70, %v109
    %111 = vdwg.mxu0
    %112 = vmatpush.bf16.msra.mxu0 0
    %113 = vmatpush.bf16.msra.mxu0 0
    %114 = vmatpush.bf16.msra.mxu0 0
    %115 = vmatpush.bf16.msra.mxu0 0
    %116 = vmatpush.bf16.msra.mxu0 0
    %117 = vmatpush.bf16.msra.mxu0 0
    %118 = vmatpush.bf16.msra.mxu0 %v89
    %119 = vmatpush.bf16.msra.mxu0 %v87
    %120 = vmatmul.bf16.gmra.mxu0 %v96
    %v121 = vpop.f32.mrf.mxu0
    %v122 = vadd.f32 %v71, %v121
    %v123 = vpop.f32.mrf.mxu0
    %v124 = vadd.f32 %v71, %v123
    %125 = vdwg.mxu0
    %v126 = vxor.u32 %v122, 2147483648
    %v127 = vxor.u32 %v124, 2147483648
    %v128 = vmul.f32 %v126, 1.442695
    %v129 = vpow.pop %v128
    %v130 = vmul.f32 %v127, 1.442695
    %v131 = vpow.pop %v130
    %v132 = vadd.f32 %v129, 1.0
    %v133 = vadd.f32 %v131, 1.0
    %v134 = vrcp.pop %v132
    %v135 = vmul.f32 %v132, %v134
    %v136 = vsub.f32 1.0, %v135
    %v137 = vmul.f32 %v134, %v136
    %v138 = vadd.f32 %v134, %v137
    %vm139 = vweird.f32 %v132
    %vm140 = vweird.f32 %v134
    %vm141 = vmor %vm139, %vm140
    %v142 = vsel %vm141, %v134, %v138
    %v143 = vand.u32 2147483647, %v132
    %vm144 = vcmp.eq.f32.partialorder %v143, 8.507059e+37
    %v145 = vand.u32 %v132, 2147483648
    %v146 = vor.u32 1.1754944e-38, %v145
    %v147 = vsel %vm144, %v146, %v142
    %v148 = vmul.f32 1.0, %v147
    %v149 = vrcp.pop %v133
    %v150 = vmul.f32 %v133, %v149
    %v151 = vsub.f32 1.0, %v150
    %v152 = vmul.f32 %v149, %v151
    %v153 = vadd.f32 %v149, %v152
    %vm154 = vweird.f32 %v133
    %vm155 = vweird.f32 %v149
    %vm156 = vmor %vm154, %vm155
    %v157 = vsel %vm156, %v149, %v153
    %v158 = vand.u32 2147483647, %v133
    %vm159 = vcmp.eq.f32.partialorder %v158, 8.507059e+37
    %v160 = vand.u32 %v133, 2147483648
    %v161 = vor.u32 1.1754944e-38, %v160
    %v162 = vsel %vm159, %v161, %v157
    %v163 = vmul.f32 1.0, %v162
    %v164 = vmul.f32 %v108, %v148
    %v165 = vmul.f32 %v110, %v163
    %166 = vst [vmem:[#allocation8] sm:$0xff] %v164
    %167 = vst [vmem:[#allocation8 + $0x8] sm:$0xff] %v165
    // Predicated region
    $region26: #{tpu_custom_call.1} parent=1 // pred_check
      _
    $region27: #{tpu_custom_call.1} parent=1 // pred_check_branch
      %169 = sbr.rel (0) target = $region29
    $region28: #{tpu_custom_call.1} parent=1 // pred_region
      %171 = vsyncadd [#allocation4], 0
      %s172 = sshll.u32 [#allocation8], 4
      %s173 = int_to_ptr.vmem [resolvable:$true] %s172
      %s174 = sshll.u32 %s3, 4
      %s175 = int_to_ptr.hbm [resolvable:$true] %s174
      %180 = dma.vmem_to_hbm [thread:$0]  %s173, 256, %s175, [#allocation4], 128, 128, 8
    $region29: #{tpu_custom_call.1} parent=1 // pred_fallthru
      _
    // Predicated region
    $region30: #{tpu_custom_call.1} parent=1 // pred_check
      _
    $region31: #{tpu_custom_call.1} parent=1 // pred_check_branch
      %182 = sbr.rel (0) target = $region33
    $region32: #{tpu_custom_call.1} parent=1 // pred_region
      %184 = dma.done [#allocation4], 256
    $region33: #{tpu_custom_call.1} parent=1 // pred_fallthru
      _
    %185 = vsyncpa [#allocation3], 1
    %186 = vsyncpa [#allocation6], 1
    %187 = vsyncpa [#allocation4], 1

</llo_original>
